<compile_context>
chip_gen: v5e
topology: v5e:2x2
jax: 0.10.0
libtpu: 0.0.40
codegen_flags: <defaults>
</compile_context>

<pallas_src>
import functools

import jax
import jax.numpy as jnp
from jax.experimental import pallas as pl
from jax.experimental.pallas import tpu as pltpu

_LABEL_SENTINEL = jnp.iinfo(jnp.int32).min   # assumed never a real label
_SQ_SENTINEL = 1e30                          # huge but finite (avoid inf-inf NaN)


def _triplet_hinge_kernel(xa_ref, xc_ref, sqa_ref, sqc_ref, ta_ref, tc_ref,
                          o_ref, ap_acc, an_acc, *, margin):
    """One (anchor-block i, candidate-block j) step.

    xa_ref : (TM, D)  anchor features (bf16 or f32)
    xc_ref : (TN, D)  candidate features (bf16 or f32)
    sqa_ref: (1, TM)  anchor ||x||^2 (f32)
    sqc_ref: (TN, 1)  candidate ||x||^2 (f32; padded rows = huge sentinel)
    ta_ref : (1, TM)  anchor labels (int32)
    tc_ref : (TN, 1)  candidate labels (int32; padded rows = sentinel)
    o_ref  : (1, TM)  per-anchor hinge output (f32, lane-dense)
    ap_acc : (1, TM)  running hardest-positive squared distance (f32 scratch)
    an_acc : (1, TM)  running hardest-negative squared distance (f32 scratch)
    """
    j = pl.program_id(1)

    @pl.when(j == 0)
    def _():
        ap_acc[...] = jnp.full_like(ap_acc, -jnp.inf)
        an_acc[...] = jnp.full_like(an_acc, jnp.inf)

    # Gram block (TN, TM): contract the feature axis of both operands directly
    # (no in-kernel transpose); native dtype into the MXU, f32 accumulation.
    gram = jax.lax.dot_general(
        xc_ref[...], xa_ref[...],
        dimension_numbers=(((1,), (1,)), ((), ())),
        preferred_element_type=jnp.float32)

    # Clamped squared distances; sqrt is deferred to the finalize step
    # (monotone, so the argmax/argmin mining is unchanged).
    d2 = sqc_ref[...] + sqa_ref[...] - 2.0 * gram          # (TN, TM) f32
    d2 = jnp.maximum(d2, 1e-12)

    same = tc_ref[...] == ta_ref[...]                      # (TN, TM) bool

    # Reduce over the candidate (sublane) axis immediately so only one masked
    # (TN, TM) block is live at a time.
    ap_blk = jnp.max(jnp.where(same, d2, jnp.float32(-jnp.inf)),
                     axis=0, keepdims=True)                # (1, TM)
    ap_acc[...] = jnp.maximum(ap_acc[...], ap_blk)

    an_blk = jnp.min(jnp.where(same, jnp.float32(jnp.inf), d2),
                     axis=0, keepdims=True)                # (1, TM)
    an_acc[...] = jnp.minimum(an_acc[...], an_blk)

    @pl.when(j == pl.num_programs(1) - 1)
    def _():
        # MarginRankingLoss(margin)(dist_an, dist_ap, y=1) per anchor:
        #   max(0, dist_ap - dist_an + margin).  Mean over the un-padded
        #   anchors is taken in the wrapper (lane-dense output row).
        # maximum(..., 0) guards padded-anchor lanes that never found a
        # positive (they are sliced off before the mean anyway).
        dist_ap = jnp.sqrt(jnp.maximum(ap_acc[...], 0.0))
        dist_an = jnp.sqrt(jnp.maximum(an_acc[...], 0.0))
        o_ref[...] = jnp.maximum(dist_ap - dist_an + jnp.float32(margin), 0.0)


def _ceil_to(x, m):
    return ((x + m - 1) // m) * m


def triplet_loss(inputs, targets, margin=0.2, *, block_m=512, block_n=256,
                 feature_dtype=jnp.bfloat16):
    """Triplet loss with batch-hard mining.

    inputs : (N, D) float features; targets: (N,) integer labels (>= 0).

    Tile-size guidance: block_m is the HBM-traffic lever (candidate features
    are re-streamed N/block_m times); block_n fills the MXU.  Defaults
    (512, 256) suit v6e; use (256-512, 256) on v7x (64 MiB VMEM, keep >= 2
    anchor blocks for the 2 TensorCores) and (256, 256) on v5e.
    """
    assert block_m % 128 == 0 and block_n % 128 == 0
    n, d = inputs.shape

    # Clamp tiles for small problems (tiles must stay lane/sublane aligned).
    n128 = _ceil_to(n, 128)
    bm = min(block_m, n128)
    bn = min(block_n, n128)

    # Pad anchors / candidates separately to multiples of their own tile.
    n_pad_m = _ceil_to(n, bm)
    n_pad_n = _ceil_to(n, bn)

    x_a = jnp.pad(inputs, ((0, n_pad_m - n), (0, 0))).astype(feature_dtype)
    x_c = jnp.pad(inputs, ((0, n_pad_n - n), (0, 0))).astype(feature_dtype)

    # Squared norms in f32 from the (cast) features so the self-distance
    # cancels cleanly against the MXU Gram values.
    sq_a = jnp.sum(x_a.astype(jnp.float32) ** 2, axis=1)             # (n_pad_m,)
    sq_c = jnp.sum(x_c.astype(jnp.float32) ** 2, axis=1)             # (n_pad_n,)
    # Padded candidates: huge finite ||x||^2 -> can never be the hardest
    # negative; sentinel label below keeps them out of the positive pool.
    sq_c = jnp.where(jnp.arange(n_pad_n) < n, sq_c, jnp.float32(_SQ_SENTINEL))
    sq_row = sq_a.reshape(1, n_pad_m)
    sq_col = sq_c.reshape(n_pad_n, 1)

    t32 = targets.astype(jnp.int32)
    t_row = jnp.pad(t32, (0, n_pad_m - n),
                    constant_values=_LABEL_SENTINEL).reshape(1, n_pad_m)
    t_col = jnp.pad(t32, (0, n_pad_n - n),
                    constant_values=_LABEL_SENTINEL).reshape(n_pad_n, 1)

    grid = (n_pad_m // bm, n_pad_n // bn)
    kernel = functools.partial(_triplet_hinge_kernel, margin=float(margin))

    # VMEM budget: double-buffered feature tiles dominate; add headroom but
    # stay within every generation's physical VMEM (v7x: 64 MiB per TC).
    feat_bytes = jnp.dtype(feature_dtype).itemsize
    est = 2 * (bm + bn) * d * feat_bytes
    vmem_limit = int(min(64 * 2**20, max(32 * 2**20, 2 * est + 8 * 2**20)))

    hinge = pl.pallas_call(
        kernel,
        out_shape=jax.ShapeDtypeStruct((1, n_pad_m), jnp.float32),
        grid_spec=pltpu.PrefetchScalarGridSpec(
            num_scalar_prefetch=0,
            grid=grid,
            in_specs=[
                pl.BlockSpec((bm, d), lambda i, j: (i, 0)),   # anchor feats
                pl.BlockSpec((bn, d), lambda i, j: (j, 0)),   # cand feats
                pl.BlockSpec((1, bm), lambda i, j: (0, i)),   # anchor ||x||^2
                pl.BlockSpec((bn, 1), lambda i, j: (j, 0)),   # cand ||x||^2
                pl.BlockSpec((1, bm), lambda i, j: (0, i)),   # anchor labels
                pl.BlockSpec((bn, 1), lambda i, j: (j, 0)),   # cand labels
            ],
            out_specs=pl.BlockSpec((1, bm), lambda i, j: (0, i)),
            scratch_shapes=[
                pltpu.VMEM((1, bm), jnp.float32),   # running hardest positive (d^2)
                pltpu.VMEM((1, bm), jnp.float32),   # running hardest negative (d^2)
            ],
        ),
        compiler_params=pltpu.CompilerParams(
            dimension_semantics=("parallel", "arbitrary"),
            vmem_limit_bytes=vmem_limit),
    )(x_a, x_c, sq_row, sq_col, t_row, t_col)

    # Mean over the real (un-padded) anchors only.
    return jnp.mean(hinge[0, :n])


def triplet_loss_ref(inputs, targets, margin=0.2):
    """Pure-JAX reference mirroring the PyTorch forward, for sanity checks."""
    x = inputs.astype(jnp.float32)
    sq = jnp.sum(x * x, axis=1, keepdims=True)
    d2 = sq + sq.T - 2.0 * (x @ x.T)
    dist = jnp.sqrt(jnp.maximum(d2, 1e-12))
    mask = targets[:, None] == targets[None, :]
    dist_ap = jnp.max(jnp.where(mask, dist, -jnp.inf), axis=1)
    dist_an = jnp.min(jnp.where(mask, jnp.inf, dist), axis=1)
    return jnp.mean(jnp.maximum(dist_ap - dist_an + margin, 0.0))


if __name__ == "__main__":
    key = jax.random.PRNGKey(0)
    k1, k2, k3 = jax.random.split(key, 3)

    # Small case: 4 identities x 2 samples, feat_dim=32.  f32 feature path ->
    # exact match against the f32 reference (single-tile grid).
    n1, d1 = 8, 32
    x1 = jax.random.normal(k1, (n1, d1), dtype=jnp.float32)
    t1 = jnp.array([0, 0, 1, 1, 2, 2, 3, 3], dtype=jnp.int32)
    loss1 = triplet_loss(x1, t1, margin=0.2, feature_dtype=jnp.float32)
    jax.block_until_ready(loss1)
    ref1 = triplet_loss_ref(x1, t1, margin=0.2)
    assert jnp.allclose(loss1, ref1, rtol=1e-4, atol=1e-4), (loss1, ref1)

    # Larger, non-multiple-of-tile case exercising the multi-block grid, the
    # asymmetric padding, the sentinel padding and the default bf16 feature
    # streaming (looser tolerance: bf16 Gram vs f32 reference).
    n2, d2 = 300, 64
    x2 = jax.random.normal(k2, (n2, d2), dtype=jnp.float32)
    t2 = jax.random.randint(k3, (n2,), 0, 16, dtype=jnp.int32)
    loss2 = triplet_loss(x2, t2, margin=0.2)   # default bf16 features
    jax.block_until_ready(loss2)
    ref2 = triplet_loss_ref(x2, t2, margin=0.2)
    assert jnp.allclose(loss2, ref2, rtol=3e-2, atol=3e-2), (loss2, ref2)

    # Same case with f32 features: tight check of the tiled mining logic.
    loss2_f32 = triplet_loss(x2, t2, margin=0.2, feature_dtype=jnp.float32)
    jax.block_until_ready(loss2_f32)
    assert jnp.allclose(loss2_f32, ref2, rtol=1e-4, atol=1e-4), (loss2_f32, ref2)

    print("KERNEL_OK")
</pallas_src>

<mosaic_0001>
module attributes {stable_mosaic.version = 11 : i64} {
  func.func @_triplet_hinge_kernel(%arg0: i32, %arg1: i32, %arg2: memref<128x32xf32, #tpu.memory_space<vmem>>, %arg3: memref<128x32xf32, #tpu.memory_space<vmem>>, %arg4: memref<1x128xf32, #tpu.memory_space<vmem>>, %arg5: memref<128x1xf32, #tpu.memory_space<vmem>>, %arg6: memref<1x128xi32, #tpu.memory_space<vmem>>, %arg7: memref<128x1xi32, #tpu.memory_space<vmem>>, %arg8: memref<1x128xf32, #tpu.memory_space<vmem>>, %arg9: memref<1x128xf32, #tpu.memory_space<vmem>>, %arg10: memref<1x128xf32, #tpu.memory_space<vmem>>) attributes {dimension_semantics = [#tpu.dimension_semantics<parallel>, #tpu.dimension_semantics<arbitrary>], iteration_bounds = array<i64: 1, 1>, scalar_prefetch = 0 : i64, scratch_operands = 2 : i64, tpu.core_type = #tpu.core_type<tc>, window_params = [{transform_indices = @transform_0, window_bounds = array<i64: 128, 32>}, {transform_indices = @transform_1, window_bounds = array<i64: 128, 32>}, {transform_indices = @transform_2, window_bounds = array<i64: 1, 128>}, {transform_indices = @transform_3, window_bounds = array<i64: 128, 1>}, {transform_indices = @transform_4, window_bounds = array<i64: 1, 128>}, {transform_indices = @transform_5, window_bounds = array<i64: 128, 1>}, {transform_indices = @transform_6, window_bounds = array<i64: 1, 128>}]} {
    %c0_i32 = arith.constant 0 : i32
    %0 = arith.cmpi eq, %arg1, %c0_i32 : i32
    %1 = arith.extui %0 : i1 to i32
    %c0_i32_0 = arith.constant 0 : i32
    %2 = arith.cmpi ne, %1, %c0_i32_0 : i32
    scf.if %2 {
      %cst_28 = arith.constant 0xFF800000 : f32
      %38 = vector.broadcast %cst_28 : f32 to vector<1x128xf32>
      %c0_29 = arith.constant 0 : index
      %c0_30 = arith.constant 0 : index
      %39 = vector.load %arg9[%c0_29, %c0_30] : memref<1x128xf32, #tpu.memory_space<vmem>>, vector<1x128xf32>
      tpu.vector_store %arg9[%c0_29, %c0_30], %38 {strides = array<i32>} : memref<1x128xf32, #tpu.memory_space<vmem>>, vector<1x128xf32>,
      %cst_31 = arith.constant 0x7F800000 : f32
      %40 = vector.broadcast %cst_31 : f32 to vector<1x128xf32>
      %c0_32 = arith.constant 0 : index
      %c0_33 = arith.constant 0 : index
      %41 = vector.load %arg10[%c0_32, %c0_33] : memref<1x128xf32, #tpu.memory_space<vmem>>, vector<1x128xf32>
      tpu.vector_store %arg10[%c0_32, %c0_33], %40 {strides = array<i32>} : memref<1x128xf32, #tpu.memory_space<vmem>>, vector<1x128xf32>,
    } else {
    }
    %c0 = arith.constant 0 : index
    %c0_1 = arith.constant 0 : index
    %3 = vector.load %arg3[%c0, %c0_1] : memref<128x32xf32, #tpu.memory_space<vmem>>, vector<128x32xf32>
    %c0_2 = arith.constant 0 : index
    %c0_3 = arith.constant 0 : index
    %4 = vector.load %arg2[%c0_2, %c0_3] : memref<128x32xf32, #tpu.memory_space<vmem>>, vector<128x32xf32>
    %cst = arith.constant dense<0.000000e+00> : vector<128x128xf32>
    %5 = tpu.matmul %3, %4, %cst {dimension_numbers = #tpu.dot_dimension_numbers<[1], [1], [0], [0], [0, 0, 1, 0], [], []>} : vector<128x32xf32>, vector<128x32xf32>, vector<128x128xf32> -> vector<128x128xf32>
    %c0_4 = arith.constant 0 : index
    %c0_5 = arith.constant 0 : index
    %6 = vector.load %arg5[%c0_4, %c0_5] : memref<128x1xf32, #tpu.memory_space<vmem>>, vector<128x1xf32>
    %c0_6 = arith.constant 0 : index
    %c0_7 = arith.constant 0 : index
    %7 = vector.load %arg4[%c0_6, %c0_7] : memref<1x128xf32, #tpu.memory_space<vmem>>, vector<1x128xf32>
    %8 = vector.broadcast %6 : vector<128x1xf32> to vector<128x128xf32>
    %9 = vector.broadcast %7 : vector<1x128xf32> to vector<128x128xf32>
    %10 = arith.addf %8, %9 : vector<128x128xf32>
    %cst_8 = arith.constant 2.000000e+00 : f32
    %11 = vector.broadcast %cst_8 : f32 to vector<128x128xf32>
    %12 = arith.mulf %11, %5 : vector<128x128xf32>
    %13 = arith.subf %10, %12 : vector<128x128xf32>
    %cst_9 = arith.constant 9.99999996E-13 : f32
    %14 = vector.broadcast %cst_9 : f32 to vector<128x128xf32>
    %15 = arith.maximumf %13, %14 : vector<128x128xf32>
    %c0_10 = arith.constant 0 : index
    %c0_11 = arith.constant 0 : index
    %16 = vector.load %arg7[%c0_10, %c0_11] : memref<128x1xi32, #tpu.memory_space<vmem>>, vector<128x1xi32>
    %c0_12 = arith.constant 0 : index
    %c0_13 = arith.constant 0 : index
    %17 = vector.load %arg6[%c0_12, %c0_13] : memref<1x128xi32, #tpu.memory_space<vmem>>, vector<1x128xi32>
    %18 = vector.broadcast %16 : vector<128x1xi32> to vector<128x128xi32>
    %19 = vector.broadcast %17 : vector<1x128xi32> to vector<128x128xi32>
    %20 = arith.cmpi eq, %18, %19 : vector<128x128xi32>
    %cst_14 = arith.constant 0xFF800000 : f32
    %21 = vector.broadcast %cst_14 : f32 to vector<128x128xf32>
    %22 = arith.select %20, %15, %21 : vector<128x128xi1>, vector<128x128xf32>
    %cst_15 = arith.constant dense<0xFF800000> : vector<128xf32>
    %23 = vector.multi_reduction <maximumf>, %22, %cst_15 [0] : vector<128x128xf32> to vector<128xf32>
    %24 = vector.shape_cast %23 : vector<128xf32> to vector<1x128xf32>
    %c0_16 = arith.constant 0 : index
    %c0_17 = arith.constant 0 : index
    %25 = vector.load %arg9[%c0_16, %c0_17] : memref<1x128xf32, #tpu.memory_space<vmem>>, vector<1x128xf32>
    %26 = arith.maximumf %25, %24 : vector<1x128xf32>
    %c0_18 = arith.constant 0 : index
    %c0_19 = arith.constant 0 : index
    %27 = vector.load %arg9[%c0_18, %c0_19] : memref<1x128xf32, #tpu.memory_space<vmem>>, vector<1x128xf32>
    tpu.vector_store %arg9[%c0_18, %c0_19], %26 {strides = array<i32>} : memref<1x128xf32, #tpu.memory_space<vmem>>, vector<1x128xf32>,
    %cst_20 = arith.constant 0x7F800000 : f32
    %28 = vector.broadcast %cst_20 : f32 to vector<128x128xf32>
    %29 = arith.select %20, %28, %15 : vector<128x128xi1>, vector<128x128xf32>
    %cst_21 = arith.constant dense<0x7F800000> : vector<128xf32>
    %30 = vector.multi_reduction <minimumf>, %29, %cst_21 [0] : vector<128x128xf32> to vector<128xf32>
    %31 = vector.shape_cast %30 : vector<128xf32> to vector<1x128xf32>
    %c0_22 = arith.constant 0 : index
    %c0_23 = arith.constant 0 : index
    %32 = vector.load %arg10[%c0_22, %c0_23] : memref<1x128xf32, #tpu.memory_space<vmem>>, vector<1x128xf32>
    %33 = arith.minimumf %32, %31 : vector<1x128xf32>
    %c0_24 = arith.constant 0 : index
    %c0_25 = arith.constant 0 : index
    %34 = vector.load %arg10[%c0_24, %c0_25] : memref<1x128xf32, #tpu.memory_space<vmem>>, vector<1x128xf32>
    tpu.vector_store %arg10[%c0_24, %c0_25], %33 {strides = array<i32>} : memref<1x128xf32, #tpu.memory_space<vmem>>, vector<1x128xf32>,
    %c0_i32_26 = arith.constant 0 : i32
    %35 = arith.cmpi eq, %arg1, %c0_i32_26 : i32
    %36 = arith.extui %35 : i1 to i32
    %c0_i32_27 = arith.constant 0 : i32
    %37 = arith.cmpi ne, %36, %c0_i32_27 : i32
    scf.if %37 {
      %c0_28 = arith.constant 0 : index
      %c0_29 = arith.constant 0 : index
      %38 = vector.load %arg9[%c0_28, %c0_29] : memref<1x128xf32, #tpu.memory_space<vmem>>, vector<1x128xf32>
      %cst_30 = arith.constant 0.000000e+00 : f32
      %39 = vector.broadcast %cst_30 : f32 to vector<1x128xf32>
      %40 = arith.maximumf %38, %39 : vector<1x128xf32>
      %41 = math.sqrt %40 : vector<1x128xf32>
      %c0_31 = arith.constant 0 : index
      %c0_32 = arith.constant 0 : index
      %42 = vector.load %arg10[%c0_31, %c0_32] : memref<1x128xf32, #tpu.memory_space<vmem>>, vector<1x128xf32>
      %cst_33 = arith.constant 0.000000e+00 : f32
      %43 = vector.broadcast %cst_33 : f32 to vector<1x128xf32>
      %44 = arith.maximumf %42, %43 : vector<1x128xf32>
      %45 = math.sqrt %44 : vector<1x128xf32>
      %46 = arith.subf %41, %45 : vector<1x128xf32>
      %cst_34 = arith.constant 2.000000e-01 : f32
      %47 = vector.broadcast %cst_34 : f32 to vector<1x128xf32>
      %48 = arith.addf %46, %47 : vector<1x128xf32>
      %cst_35 = arith.constant 0.000000e+00 : f32
      %49 = vector.broadcast %cst_35 : f32 to vector<1x128xf32>
      %50 = arith.maximumf %48, %49 : vector<1x128xf32>
      %c0_36 = arith.constant 0 : index
      %c0_37 = arith.constant 0 : index
      %51 = vector.load %arg8[%c0_36, %c0_37] : memref<1x128xf32, #tpu.memory_space<vmem>>, vector<1x128xf32>
      tpu.vector_store %arg8[%c0_36, %c0_37], %50 {strides = array<i32>} : memref<1x128xf32, #tpu.memory_space<vmem>>, vector<1x128xf32>,
    } else {
    }
    return
  }
  func.func @transform_0(%arg0: i32, %arg1: i32) -> (i32, i32) {
    %c0_i32 = arith.constant 0 : i32
    %c0_i32_0 = arith.constant 0 : i32
    return %arg0, %c0_i32 : i32, i32
  }
  func.func @transform_1(%arg0: i32, %arg1: i32) -> (i32, i32) {
    %c0_i32 = arith.constant 0 : i32
    %c0_i32_0 = arith.constant 0 : i32
    return %arg1, %c0_i32 : i32, i32
  }
  func.func @transform_2(%arg0: i32, %arg1: i32) -> (i32, i32) {
    %c0_i32 = arith.constant 0 : i32
    %c0_i32_0 = arith.constant 0 : i32
    return %c0_i32, %arg0 : i32, i32
  }
  func.func @transform_3(%arg0: i32, %arg1: i32) -> (i32, i32) {
    %c0_i32 = arith.constant 0 : i32
    %c0_i32_0 = arith.constant 0 : i32
    return %arg1, %c0_i32 : i32, i32
  }
  func.func @transform_4(%arg0: i32, %arg1: i32) -> (i32, i32) {
    %c0_i32 = arith.constant 0 : i32
    %c0_i32_0 = arith.constant 0 : i32
    return %c0_i32, %arg0 : i32, i32
  }
  func.func @transform_5(%arg0: i32, %arg1: i32) -> (i32, i32) {
    %c0_i32 = arith.constant 0 : i32
    %c0_i32_0 = arith.constant 0 : i32
    return %arg1, %c0_i32 : i32, i32
  }
  func.func @transform_6(%arg0: i32, %arg1: i32) -> (i32, i32) {
    %c0_i32 = arith.constant 0 : i32
    %c0_i32_0 = arith.constant 0 : i32
    return %c0_i32, %arg0 : i32, i32
  }
}

</mosaic_0001>

<llo_original>
// kernel: tpu_custom_call.1
$region0: #{tpu_custom_call.1}
  #allocation0 [shape = 'u32[]', space=smem, size = 0x4, offset = 0x4, fixed_abs, tag = 'smem constant byte address 0x4 - core index']
  #allocation1 [shape = 'u32[72,128]{1,0:T(1,128)}', space=vmem, size = 0x9000, scoped, tag = 'internal scratch']
  #allocation2 [shape = 'f32[1,128]{1,0:T(1,128)}', space=vmem, size = 0x200, scoped, tag = 'scratch operand']
  #allocation3 [shape = 'f32[1,128]{1,0:T(1,128)}', space=vmem, size = 0x200, scoped, tag = 'scratch operand']
  %s0 = inlined_call_operand.vmem [shape: f32[128,32], index: 0, kind: input, shape index: {}]
  %s1 = inlined_call_operand.vmem [shape: f32[128,32], index: 1, kind: input, shape index: {}]
  %s2 = inlined_call_operand.vmem [shape: f32[1,128], index: 2, kind: input, shape index: {}]
  %s3 = inlined_call_operand.vmem [shape: f32[128,1], index: 3, kind: input, shape index: {}]
  %s4 = inlined_call_operand.vmem [shape: s32[1,128], index: 4, kind: input, shape index: {}]
  %s5 = inlined_call_operand.vmem [shape: s32[128,1], index: 5, kind: input, shape index: {}]
  %s6 = inlined_call_operand.hbm [shape: f32[1,128], index: 6, kind: output, shape index: {}]
  %s7 = sld [smem:[#allocation0]]
  $region42: #{tpu_custom_call.1} parent=0
    _
  %s9 = ssub.s32 1, %s7
  %s10 = scalar_select 0, %s9, %s7
  $region1: #{tpu_custom_call.1} parent=0
    #allocation4 [shape = 'u8[512]{0}', space=vmem, size = 0x400, scoped, tag = 'output window, operand 0, single buffered']
    #allocation5 [shape = 's32[1]{0}', space=sflag, size = 0x4, scoped, tag = 'scoped memory for tpu_custom_call.1']
    %11 = vsyncpa [#allocation5], 0
    // Predicated region
    $region2: #{tpu_custom_call.1} parent=1 // pred_check
      _
    $region3: #{tpu_custom_call.1} parent=1 // pred_check_branch
      %13 = sbr.rel (0) target = $region5
    $region4: #{tpu_custom_call.1} parent=1 // pred_region
      _
    $region5: #{tpu_custom_call.1} parent=1 // pred_fallthru
      _
    // Predicated region
    $region6: #{tpu_custom_call.1} parent=1 // pred_check
      _
    $region7: #{tpu_custom_call.1} parent=1 // pred_check_branch
      %15 = sbr.rel (0) target = $region9
    $region8: #{tpu_custom_call.1} parent=1 // pred_region
      _
    $region9: #{tpu_custom_call.1} parent=1 // pred_fallthru
      _
    // Predicated region
    $region10: #{tpu_custom_call.1} parent=1 // pred_check
      _
    $region11: #{tpu_custom_call.1} parent=1 // pred_check_branch
      %17 = sbr.rel (0) target = $region13
    $region12: #{tpu_custom_call.1} parent=1 // pred_region
      _
    $region13: #{tpu_custom_call.1} parent=1 // pred_fallthru
      _
    // Predicated region
    $region14: #{tpu_custom_call.1} parent=1 // pred_check
      _
    $region15: #{tpu_custom_call.1} parent=1 // pred_check_branch
      %19 = sbr.rel (0) target = $region17
    $region16: #{tpu_custom_call.1} parent=1 // pred_region
      _
    $region17: #{tpu_custom_call.1} parent=1 // pred_fallthru
      _
    // Predicated region
    $region18: #{tpu_custom_call.1} parent=1 // pred_check
      _
    $region19: #{tpu_custom_call.1} parent=1 // pred_check_branch
      %21 = sbr.rel (0) target = $region21
    $region20: #{tpu_custom_call.1} parent=1 // pred_region
      _
    $region21: #{tpu_custom_call.1} parent=1 // pred_fallthru
      _
    // Predicated region
    $region22: #{tpu_custom_call.1} parent=1 // pred_check
      _
    $region23: #{tpu_custom_call.1} parent=1 // pred_check_branch
      %23 = sbr.rel (0) target = $region25
    $region24: #{tpu_custom_call.1} parent=1 // pred_region
      _
    $region25: #{tpu_custom_call.1} parent=1 // pred_fallthru
      _
    %p24 = scmp.eq.s32.totalorder 0, 0
    // Predicated region
    $region26: #{tpu_custom_call.1} parent=1 // pred_check
      %p25 = pneg %p24
    $region27: #{tpu_custom_call.1} parent=1 // pred_check_branch
      %27 = sbr.rel (%p25) target = $region29
    $region28: #{tpu_custom_call.1} parent=1 // pred_region
      %28 = vst [vmem:[#allocation2] sm:$0x1] -inf
      %29 = vst [vmem:[#allocation3] sm:$0x1] inf
    $region29: #{tpu_custom_call.1} parent=1 // pred_fallthru
      _
    %v30 = vld [vmem:[%s1] sm:$0xff]
    %v31 = vld [vmem:[%s1 + $0x8] sm:$0xff]
    %v32 = vld [vmem:[%s1 + $0x10] sm:$0xff]
    %v33 = vld [vmem:[%s1 + $0x18] sm:$0xff]
    %v34 = vld [vmem:[%s1 + $0x20] sm:$0xff]
    %v35 = vld [vmem:[%s1 + $0x28] sm:$0xff]
    %v36 = vld [vmem:[%s1 + $0x30] sm:$0xff]
    %v37 = vld [vmem:[%s1 + $0x38] sm:$0xff]
    %v38 = vld [vmem:[%s1 + $0x40] sm:$0xff]
    %v39 = vld [vmem:[%s1 + $0x48] sm:$0xff]
    %v40 = vld [vmem:[%s1 + $0x50] sm:$0xff]
    %v41 = vld [vmem:[%s1 + $0x58] sm:$0xff]
    %v42 = vld [vmem:[%s1 + $0x60] sm:$0xff]
    %v43 = vld [vmem:[%s1 + $0x68] sm:$0xff]
    %v44 = vld [vmem:[%s1 + $0x70] sm:$0xff]
    %v45 = vld [vmem:[%s1 + $0x78] sm:$0xff]
    %v46 = vld [vmem:[%s0] sm:$0xff]
    %v47 = vld [vmem:[%s0 + $0x8] sm:$0xff]
    %v48 = vld [vmem:[%s0 + $0x10] sm:$0xff]
    %v49 = vld [vmem:[%s0 + $0x18] sm:$0xff]
    %v50 = vld [vmem:[%s0 + $0x20] sm:$0xff]
    %v51 = vld [vmem:[%s0 + $0x28] sm:$0xff]
    %v52 = vld [vmem:[%s0 + $0x30] sm:$0xff]
    %v53 = vld [vmem:[%s0 + $0x38] sm:$0xff]
    %v54 = vld [vmem:[%s0 + $0x40] sm:$0xff]
    %v55 = vld [vmem:[%s0 + $0x48] sm:$0xff]
    %v56 = vld [vmem:[%s0 + $0x50] sm:$0xff]
    %v57 = vld [vmem:[%s0 + $0x58] sm:$0xff]
    %v58 = vld [vmem:[%s0 + $0x60] sm:$0xff]
    %v59 = vld [vmem:[%s0 + $0x68] sm:$0xff]
    %v60 = vld [vmem:[%s0 + $0x70] sm:$0xff]
    %v61 = vld [vmem:[%s0 + $0x78] sm:$0xff]
    %vm62 = vcmask 261120
    %v64 = vsel %vm62, %v30, 0
    %v67 = vsel %vm62, %v31, 0
    %v70 = vsel %vm62, %v32, 0
    %v73 = vsel %vm62, %v33, 0
    %v76 = vsel %vm62, %v34, 0
    %v79 = vsel %vm62, %v35, 0
    %v82 = vsel %vm62, %v36, 0
    %v85 = vsel %vm62, %v37, 0
    %v88 = vsel %vm62, %v38, 0
    %v91 = vsel %vm62, %v39, 0
    %v94 = vsel %vm62, %v40, 0
    %v97 = vsel %vm62, %v41, 0
    %v100 = vsel %vm62, %v42, 0
    %v103 = vsel %vm62, %v43, 0
    %v106 = vsel %vm62, %v44, 0
    %v109 = vsel %vm62, %v45, 0
    %v112 = vsel %vm62, %v46, 0
    %v115 = vsel %vm62, %v47, 0
    %v118 = vsel %vm62, %v48, 0
    %v121 = vsel %vm62, %v49, 0
    %v124 = vsel %vm62, %v50, 0
    %v127 = vsel %vm62, %v51, 0
    %v130 = vsel %vm62, %v52, 0
    %v133 = vsel %vm62, %v53, 0
    %v136 = vsel %vm62, %v54, 0
    %v139 = vsel %vm62, %v55, 0
    %v142 = vsel %vm62, %v56, 0
    %v145 = vsel %vm62, %v57, 0
    %v148 = vsel %vm62, %v58, 0
    %v151 = vsel %vm62, %v59, 0
    %v154 = vsel %vm62, %v60, 0
    %v157 = vsel %vm62, %v61, 0
    %159 = vmatpush.xpose.msra.mxu0 %v157
    %160 = vmatpush.xpose.msra.mxu0 %v154
    %161 = vmatpush.xpose.msra.mxu0 %v151
    %162 = vmatpush.xpose.msra.mxu0 %v148
    %163 = vmatpush.xpose.msra.mxu0 %v145
    %164 = vmatpush.xpose.msra.mxu0 %v142
    %165 = vmatpush.xpose.msra.mxu0 %v139
    %166 = vmatpush.xpose.msra.mxu0 %v136
    %167 = vmatpush.xpose.msra.mxu0 %v133
    %168 = vmatpush.xpose.msra.mxu0 %v130
    %169 = vmatpush.xpose.msra.mxu0 %v127
    %170 = vmatpush.xpose.msra.mxu0 %v124
    %171 = vmatpush.xpose.msra.mxu0 %v121
    %172 = vmatpush.xpose.msra.mxu0 %v118
    %173 = vmatpush.xpose.msra.mxu0 %v115
    %174 = vmatpush.xpose.msra.mxu0 %v112
    %175 = vmatmul.f32.gmra.mxu0 %v64
    %v176 = vpop.f32.mrf.mxu0
    %v177 = vadd.f32 0.0, %v176
    %178 = vmatmul.f32.gmra.mxu0 %v67
    %v179 = vpop.f32.mrf.mxu0
    %v180 = vadd.f32 0.0, %v179
    %181 = vmatmul.f32.gmra.mxu0 %v70
    %v182 = vpop.f32.mrf.mxu0
    %v183 = vadd.f32 0.0, %v182
    %184 = vmatmul.f32.gmra.mxu0 %v73
    %v185 = vpop.f32.mrf.mxu0
    %v186 = vadd.f32 0.0, %v185
    %187 = vmatmul.f32.gmra.mxu0 %v76
    %v188 = vpop.f32.mrf.mxu0
    %v189 = vadd.f32 0.0, %v188
    %190 = vmatmul.f32.gmra.mxu0 %v79
    %v191 = vpop.f32.mrf.mxu0
    %v192 = vadd.f32 0.0, %v191
    %193 = vmatmul.f32.gmra.mxu0 %v82
    %v194 = vpop.f32.mrf.mxu0
    %v195 = vadd.f32 0.0, %v194
    %196 = vmatmul.f32.gmra.mxu0 %v85
    %v197 = vpop.f32.mrf.mxu0
    %v198 = vadd.f32 0.0, %v197
    %199 = vmatmul.f32.gmra.mxu0 %v88
    %v200 = vpop.f32.mrf.mxu0
    %v201 = vadd.f32 0.0, %v200
    %202 = vmatmul.f32.gmra.mxu0 %v91
    %v203 = vpop.f32.mrf.mxu0
    %v204 = vadd.f32 0.0, %v203
    %205 = vmatmul.f32.gmra.mxu0 %v94
    %v206 = vpop.f32.mrf.mxu0
    %v207 = vadd.f32 0.0, %v206
    %208 = vmatmul.f32.gmra.mxu0 %v97
    %v209 = vpop.f32.mrf.mxu0
    %v210 = vadd.f32 0.0, %v209
    %211 = vmatmul.f32.gmra.mxu0 %v100
    %v212 = vpop.f32.mrf.mxu0
    %v213 = vadd.f32 0.0, %v212
    %214 = vmatmul.f32.gmra.mxu0 %v103
    %v215 = vpop.f32.mrf.mxu0
    %v216 = vadd.f32 0.0, %v215
    %217 = vmatmul.f32.gmra.mxu0 %v106
    %v218 = vpop.f32.mrf.mxu0
    %v219 = vadd.f32 0.0, %v218
    %220 = vmatmul.f32.gmra.mxu0 %v109
    %v221 = vpop.f32.mrf.mxu0
    %v222 = vadd.f32 0.0, %v221
    %223 = vdwg.mxu0
    %v224 = vld [vmem:[%s3] sm:$0xff]
    %v225 = vld [vmem:[%s3 + $0x8] sm:$0xff]
    %v226 = vld [vmem:[%s3 + $0x10] sm:$0xff]
    %v227 = vld [vmem:[%s3 + $0x18] sm:$0xff]
    %v228 = vld [vmem:[%s3 + $0x20] sm:$0xff]
    %v229 = vld [vmem:[%s3 + $0x28] sm:$0xff]
    %v230 = vld [vmem:[%s3 + $0x30] sm:$0xff]
    %v231 = vld [vmem:[%s3 + $0x38] sm:$0xff]
    %v232 = vld [vmem:[%s3 + $0x40] sm:$0xff]
    %v233 = vld [vmem:[%s3 + $0x48] sm:$0xff]
    %v234 = vld [vmem:[%s3 + $0x50] sm:$0xff]
    %v235 = vld [vmem:[%s3 + $0x58] sm:$0xff]
    %v236 = vld [vmem:[%s3 + $0x60] sm:$0xff]
    %v237 = vld [vmem:[%s3 + $0x68] sm:$0xff]
    %v238 = vld [vmem:[%s3 + $0x70] sm:$0xff]
    %v239 = vld [vmem:[%s3 + $0x78] sm:$0xff]
    %v240 = vld [vmem:[%s2] sm:$0x1]
    %242 = vset.pattern.permute.xlu0 0
    %243 = vperm.xlu0 %242, %v224
    %v244 = vpop.permute.xlu0 %243
    %247 = vset.pattern.permute.xlu0 0
    %248 = vperm.xlu0 %247, %v225
    %v249 = vpop.permute.xlu0 %248
    %252 = vset.pattern.permute.xlu0 0
    %253 = vperm.xlu0 %252, %v226
    %v254 = vpop.permute.xlu0 %253
    %257 = vset.pattern.permute.xlu0 0
    %258 = vperm.xlu0 %257, %v227
    %v259 = vpop.permute.xlu0 %258
    %262 = vset.pattern.permute.xlu0 0
    %263 = vperm.xlu0 %262, %v228
    %v264 = vpop.permute.xlu0 %263
    %267 = vset.pattern.permute.xlu0 0
    %268 = vperm.xlu0 %267, %v229
    %v269 = vpop.permute.xlu0 %268
    %272 = vset.pattern.permute.xlu0 0
    %273 = vperm.xlu0 %272, %v230
    %v274 = vpop.permute.xlu0 %273
    %277 = vset.pattern.permute.xlu0 0
    %278 = vperm.xlu0 %277, %v231
    %v279 = vpop.permute.xlu0 %278
    %282 = vset.pattern.permute.xlu0 0
    %283 = vperm.xlu0 %282, %v232
    %v284 = vpop.permute.xlu0 %283
    %287 = vset.pattern.permute.xlu0 0
    %288 = vperm.xlu0 %287, %v233
    %v289 = vpop.permute.xlu0 %288
    %292 = vset.pattern.permute.xlu0 0
    %293 = vperm.xlu0 %292, %v234
    %v294 = vpop.permute.xlu0 %293
    %297 = vset.pattern.permute.xlu0 0
    %298 = vperm.xlu0 %297, %v235
    %v299 = vpop.permute.xlu0 %298
    %302 = vset.pattern.permute.xlu0 0
    %303 = vperm.xlu0 %302, %v236
    %v304 = vpop.permute.xlu0 %303
    %307 = vset.pattern.permute.xlu0 0
    %308 = vperm.xlu0 %307, %v237
    %v309 = vpop.permute.xlu0 %308
    %312 = vset.pattern.permute.xlu0 0
    %313 = vperm.xlu0 %312, %v238
    %v314 = vpop.permute.xlu0 %313
    %317 = vset.pattern.permute.xlu0 0
    %318 = vperm.xlu0 %317, %v239
    %v319 = vpop.permute.xlu0 %318
    %v322 = vperm.slane %v240, 0
    %v324 = vadd.f32 %v244, %v322
    %v325 = vadd.f32 %v249, %v322
    %v326 = vadd.f32 %v254, %v322
    %v327 = vadd.f32 %v259, %v322
    %v328 = vadd.f32 %v264, %v322
    %v329 = vadd.f32 %v269, %v322
    %v330 = vadd.f32 %v274, %v322
    %v331 = vadd.f32 %v279, %v322
    %v332 = vadd.f32 %v284, %v322
    %v333 = vadd.f32 %v289, %v322
    %v334 = vadd.f32 %v294, %v322
    %v335 = vadd.f32 %v299, %v322
    %v336 = vadd.f32 %v304, %v322
    %v337 = vadd.f32 %v309, %v322
    %v338 = vadd.f32 %v314, %v322
    %v339 = vadd.f32 %v319, %v322
    %v340 = vmul.f32 %v177, 2.0
    %v341 = vmul.f32 %v180, 2.0
    %v342 = vmul.f32 %v183, 2.0
    %v343 = vmul.f32 %v186, 2.0
    %v344 = vmul.f32 %v189, 2.0
    %v345 = vmul.f32 %v192, 2.0
    %v346 = vmul.f32 %v195, 2.0
    %v347 = vmul.f32 %v198, 2.0
    %v348 = vmul.f32 %v201, 2.0
    %v349 = vmul.f32 %v204, 2.0
    %v350 = vmul.f32 %v207, 2.0
    %v351 = vmul.f32 %v210, 2.0
    %v352 = vmul.f32 %v213, 2.0
    %v353 = vmul.f32 %v216, 2.0
    %v354 = vmul.f32 %v219, 2.0
    %v355 = vmul.f32 %v222, 2.0
    %v356 = vsub.f32 %v324, %v340
    %v357 = vsub.f32 %v325, %v341
    %v358 = vsub.f32 %v326, %v342
    %v359 = vsub.f32 %v327, %v343
    %v360 = vsub.f32 %v328, %v344
    %v361 = vsub.f32 %v329, %v345
    %v362 = vsub.f32 %v330, %v346
    %v363 = vsub.f32 %v331, %v347
    %v364 = vsub.f32 %v332, %v348
    %v365 = vsub.f32 %v333, %v349
    %v366 = vsub.f32 %v334, %v350
    %v367 = vsub.f32 %v335, %v351
    %v368 = vsub.f32 %v336, %v352
    %v369 = vsub.f32 %v337, %v353
    %v370 = vsub.f32 %v338, %v354
    %v371 = vsub.f32 %v339, %v355
    %v372 = vmax.f32 %v356, 1e-12
    %v373 = vmax.f32 %v357, 1e-12
    %v374 = vmax.f32 %v358, 1e-12
    %v375 = vmax.f32 %v359, 1e-12
    %v376 = vmax.f32 %v360, 1e-12
    %v377 = vmax.f32 %v361, 1e-12
    %v378 = vmax.f32 %v362, 1e-12
    %v379 = vmax.f32 %v363, 1e-12
    %v380 = vmax.f32 %v364, 1e-12
    %v381 = vmax.f32 %v365, 1e-12
    %v382 = vmax.f32 %v366, 1e-12
    %v383 = vmax.f32 %v367, 1e-12
    %v384 = vmax.f32 %v368, 1e-12
    %v385 = vmax.f32 %v369, 1e-12
    %v386 = vmax.f32 %v370, 1e-12
    %v387 = vmax.f32 %v371, 1e-12
    %v388 = vld [vmem:[%s5] sm:$0xff]
    %v389 = vld [vmem:[%s5 + $0x8] sm:$0xff]
    %v390 = vld [vmem:[%s5 + $0x10] sm:$0xff]
    %v391 = vld [vmem:[%s5 + $0x18] sm:$0xff]
    %v392 = vld [vmem:[%s5 + $0x20] sm:$0xff]
    %v393 = vld [vmem:[%s5 + $0x28] sm:$0xff]
    %v394 = vld [vmem:[%s5 + $0x30] sm:$0xff]
    %v395 = vld [vmem:[%s5 + $0x38] sm:$0xff]
    %v396 = vld [vmem:[%s5 + $0x40] sm:$0xff]
    %v397 = vld [vmem:[%s5 + $0x48] sm:$0xff]
    %v398 = vld [vmem:[%s5 + $0x50] sm:$0xff]
    %v399 = vld [vmem:[%s5 + $0x58] sm:$0xff]
    %v400 = vld [vmem:[%s5 + $0x60] sm:$0xff]
    %v401 = vld [vmem:[%s5 + $0x68] sm:$0xff]
    %v402 = vld [vmem:[%s5 + $0x70] sm:$0xff]
    %v403 = vld [vmem:[%s5 + $0x78] sm:$0xff]
    %v404 = vld [vmem:[%s4] sm:$0x1]
    %405 = vset.pattern.permute.xlu0 0
    %406 = vperm.xlu0 %405, %v388
    %v407 = vpop.permute.xlu0 %406
    %408 = vset.pattern.permute.xlu0 0
    %409 = vperm.xlu0 %408, %v389
    %v410 = vpop.permute.xlu0 %409
    %411 = vset.pattern.permute.xlu0 0
    %412 = vperm.xlu0 %411, %v390
    %v413 = vpop.permute.xlu0 %412
    %414 = vset.pattern.permute.xlu0 0
    %415 = vperm.xlu0 %414, %v391
    %v416 = vpop.permute.xlu0 %415
    %417 = vset.pattern.permute.xlu0 0
    %418 = vperm.xlu0 %417, %v392
    %v419 = vpop.permute.xlu0 %418
    %420 = vset.pattern.permute.xlu0 0
    %421 = vperm.xlu0 %420, %v393
    %v422 = vpop.permute.xlu0 %421
    %423 = vset.pattern.permute.xlu0 0
    %424 = vperm.xlu0 %423, %v394
    %v425 = vpop.permute.xlu0 %424
    %426 = vset.pattern.permute.xlu0 0
    %427 = vperm.xlu0 %426, %v395
    %v428 = vpop.permute.xlu0 %427
    %429 = vset.pattern.permute.xlu0 0
    %430 = vperm.xlu0 %429, %v396
    %v431 = vpop.permute.xlu0 %430
    %432 = vset.pattern.permute.xlu0 0
    %433 = vperm.xlu0 %432, %v397
    %v434 = vpop.permute.xlu0 %433
    %435 = vset.pattern.permute.xlu0 0
    %436 = vperm.xlu0 %435, %v398
    %v437 = vpop.permute.xlu0 %436
    %438 = vset.pattern.permute.xlu0 0
    %439 = vperm.xlu0 %438, %v399
    %v440 = vpop.permute.xlu0 %439
    %441 = vset.pattern.permute.xlu0 0
    %442 = vperm.xlu0 %441, %v400
    %v443 = vpop.permute.xlu0 %442
    %444 = vset.pattern.permute.xlu0 0
    %445 = vperm.xlu0 %444, %v401
    %v446 = vpop.permute.xlu0 %445
    %447 = vset.pattern.permute.xlu0 0
    %448 = vperm.xlu0 %447, %v402
    %v449 = vpop.permute.xlu0 %448
    %450 = vset.pattern.permute.xlu0 0
    %451 = vperm.xlu0 %450, %v403
    %v452 = vpop.permute.xlu0 %451
    %v453 = vperm.slane %v404, 0
    %vm454 = vcmp.eq.s32.totalorder %v407, %v453
    %vm455 = vcmp.eq.s32.totalorder %v410, %v453
    %vm456 = vcmp.eq.s32.totalorder %v413, %v453
    %vm457 = vcmp.eq.s32.totalorder %v416, %v453
    %vm458 = vcmp.eq.s32.totalorder %v419, %v453
    %vm459 = vcmp.eq.s32.totalorder %v422, %v453
    %vm460 = vcmp.eq.s32.totalorder %v425, %v453
    %vm461 = vcmp.eq.s32.totalorder %v428, %v453
    %vm462 = vcmp.eq.s32.totalorder %v431, %v453
    %vm463 = vcmp.eq.s32.totalorder %v434, %v453
    %vm464 = vcmp.eq.s32.totalorder %v437, %v453
    %vm465 = vcmp.eq.s32.totalorder %v440, %v453
    %vm466 = vcmp.eq.s32.totalorder %v443, %v453
    %vm467 = vcmp.eq.s32.totalorder %v446, %v453
    %vm468 = vcmp.eq.s32.totalorder %v449, %v453
    %vm469 = vcmp.eq.s32.totalorder %v452, %v453
    %v470 = vsel %vm454, %v372, -inf
    %v471 = vsel %vm455, %v373, -inf
    %v472 = vsel %vm456, %v374, -inf
    %v473 = vsel %vm457, %v375, -inf
    %v474 = vsel %vm458, %v376, -inf
    %v475 = vsel %vm459, %v377, -inf
    %v476 = vsel %vm460, %v378, -inf
    %v477 = vsel %vm461, %v379, -inf
    %v478 = vsel %vm462, %v380, -inf
    %v479 = vsel %vm463, %v381, -inf
    %v480 = vsel %vm464, %v382, -inf
    %v481 = vsel %vm465, %v383, -inf
    %v482 = vsel %vm466, %v384, -inf
    %v483 = vsel %vm467, %v385, -inf
    %v484 = vsel %vm468, %v386, -inf
    %v485 = vsel %vm469, %v387, -inf
    %v486 = vmax.f32 %v470, %v474
    %v487 = vmax.f32 %v471, %v475
    %v488 = vmax.f32 %v472, %v476
    %v489 = vmax.f32 %v473, %v477
    %v490 = vmax.f32 %v486, %v478
    %v491 = vmax.f32 %v487, %v479
    %v492 = vmax.f32 %v488, %v480
    %v493 = vmax.f32 %v489, %v481
    %v494 = vmax.f32 %v490, %v482
    %v495 = vmax.f32 %v491, %v483
    %v496 = vmax.f32 %v492, %v484
    %v497 = vmax.f32 %v493, %v485
    %v498 = vmax.f32 %v494, %v495
    %v499 = vmax.f32 %v496, %v497
    %v500 = vmax.f32 %v498, %v499
    %v501 = vrot.slane %v500, 4
    %v502 = vmax.f32 %v500, %v501
    %v503 = vrot.slane %v502, 2
    %v504 = vmax.f32 %v502, %v503
    %v505 = vrot.slane %v504, 1
    %v506 = vmax.f32 %v504, %v505
    %v507 = vld [vmem:[#allocation2] sm:$0x1]
    %v508 = vmax.f32 %v507, %v506
    %509 = vst [vmem:[#allocation2] sm:$0x1] %v508
    %v510 = vsel %vm454, inf, %v372
    %v511 = vsel %vm455, inf, %v373
    %v512 = vsel %vm456, inf, %v374
    %v513 = vsel %vm457, inf, %v375
    %v514 = vsel %vm458, inf, %v376
    %v515 = vsel %vm459, inf, %v377
    %v516 = vsel %vm460, inf, %v378
    %v517 = vsel %vm461, inf, %v379
    %v518 = vsel %vm462, inf, %v380
    %v519 = vsel %vm463, inf, %v381
    %v520 = vsel %vm464, inf, %v382
    %v521 = vsel %vm465, inf, %v383
    %v522 = vsel %vm466, inf, %v384
    %v523 = vsel %vm467, inf, %v385
    %v524 = vsel %vm468, inf, %v386
    %v525 = vsel %vm469, inf, %v387
    %v526 = vmin.f32 %v510, %v514
    %v527 = vmin.f32 %v511, %v515
    %v528 = vmin.f32 %v512, %v516
    %v529 = vmin.f32 %v513, %v517
    %v530 = vmin.f32 %v526, %v518
    %v531 = vmin.f32 %v527, %v519
    %v532 = vmin.f32 %v528, %v520
    %v533 = vmin.f32 %v529, %v521
    %v534 = vmin.f32 %v530, %v522
    %v535 = vmin.f32 %v531, %v523
    %v536 = vmin.f32 %v532, %v524
    %v537 = vmin.f32 %v533, %v525
    %v538 = vmin.f32 %v534, %v535
    %v539 = vmin.f32 %v536, %v537
    %v540 = vmin.f32 %v538, %v539
    %v541 = vrot.slane %v540, 4
    %v542 = vmin.f32 %v540, %v541
    %v543 = vrot.slane %v542, 2
    %v544 = vmin.f32 %v542, %v543
    %v545 = vrot.slane %v544, 1
    %v546 = vmin.f32 %v544, %v545
    %v547 = vld [vmem:[#allocation3] sm:$0x1]
    %v548 = vmin.f32 %v547, %v546
    %549 = vst [vmem:[#allocation3] sm:$0x1] %v548
    // Predicated region
    $region30: #{tpu_custom_call.1} parent=1 // pred_check
      %p550 = pneg %p24
    $region31: #{tpu_custom_call.1} parent=1 // pred_check_branch
      %552 = sbr.rel (%p550) target = $region33
    $region32: #{tpu_custom_call.1} parent=1 // pred_region
      %v553 = vld [vmem:[#allocation2] sm:$0x1]
      %v554 = vmax.f32 %v553, 0.0
      %v555 = vrsqrt.pop %v554
      %v556 = vmul.f32 %v555, %v554
      %v557 = vmul.f32 %v556, %v555
      %v558 = vmul.f32 0.5, %v557
      %v559 = vsub.f32 1.5, %v558
      %v560 = vmul.f32 %v555, %v559
      %v561 = vmul.f32 %v554, %v560
      %vm562 = vcmp.eq.f32.partialorder %v554, inf
      %v563 = vsel %vm562, %v554, %v561
      %vm564 = vcmp.eq.f32.partialorder %v554, 0.0
      %v565 = vand.u32 %v554, 2147483648
      %v566 = vsel %vm564, %v565, %v563
      %v567 = vld [vmem:[#allocation3] sm:$0x1]
      %v568 = vmax.f32 %v567, 0.0
      %v569 = vrsqrt.pop %v568
      %v570 = vmul.f32 %v569, %v568
      %v571 = vmul.f32 %v570, %v569
      %v572 = vmul.f32 0.5, %v571
      %v573 = vsub.f32 1.5, %v572
      %v574 = vmul.f32 %v569, %v573
      %v575 = vmul.f32 %v568, %v574
      %vm576 = vcmp.eq.f32.partialorder %v568, inf
      %v577 = vsel %vm576, %v568, %v575
      %vm578 = vcmp.eq.f32.partialorder %v568, 0.0
      %v579 = vand.u32 %v568, 2147483648
      %v580 = vsel %vm578, %v579, %v577
      %v581 = vsub.f32 %v566, %v580
      %v582 = vadd.f32 %v581, 0.2
      %v583 = vmax.f32 %v582, 0.0
      %584 = vst [vmem:[#allocation4] sm:$0x1] %v583
    $region33: #{tpu_custom_call.1} parent=1 // pred_fallthru
      _
    // Predicated region
    $region34: #{tpu_custom_call.1} parent=1 // pred_check
      _
    $region35: #{tpu_custom_call.1} parent=1 // pred_check_branch
      %586 = sbr.rel (0) target = $region37
    $region36: #{tpu_custom_call.1} parent=1 // pred_region
      %588 = vsyncadd [#allocation5], 0
      %s590 = sshll.u32 [#allocation4], 4
      %s591 = int_to_ptr.vmem [resolvable:$true] %s590
      %s592 = sshll.u32 %s6, 4
      %s593 = int_to_ptr.hbm [resolvable:$true] %s592
      %595 = dma.vmem_to_hbm [thread:$0]  %s591, 16, %s593, [#allocation5]
    $region37: #{tpu_custom_call.1} parent=1 // pred_fallthru
      _
    // Predicated region
    $region38: #{tpu_custom_call.1} parent=1 // pred_check
      _
    $region39: #{tpu_custom_call.1} parent=1 // pred_check_branch
      %597 = sbr.rel (0) target = $region41
    $region40: #{tpu_custom_call.1} parent=1 // pred_region
      %599 = dma.done [#allocation5], 16
    $region41: #{tpu_custom_call.1} parent=1 // pred_fallthru
      _
    %600 = vsyncpa [#allocation5], 1

</llo_original>
